<compile_context>
chip_gen: v7x
topology: tpu7x:2x2x1
jax: 0.10.0
libtpu: 0.0.40
codegen_flags: <defaults>
</compile_context>

<pallas_src>
import functools

import jax
import jax.numpy as jnp
from jax.experimental import pallas as pl
from jax.experimental.pallas import tpu as pltpu


def _round_up(x: int, m: int) -> int:
    return pl.cdiv(x, m) * m


@functools.lru_cache(maxsize=None)
def _tpu_budget():
    """(vmem_limit_bytes, tm_max, feature_multiple) tuned per TPU generation."""
    try:
        kind = jax.devices()[0].device_kind.lower()
    except Exception:
        kind = ""
    try:
        vmem_phys = pltpu.get_tpu_info().vmem_capacity_bytes
    except Exception:
        vmem_phys = 64 * 1024 * 1024 if "v7" in kind else 128 * 1024 * 1024

    if vmem_phys <= 64 * 1024 * 1024:           # v7x: 64 MiB physical per TC
        vmem_limit, tm_max = 48 * 1024 * 1024, 256
    else:                                        # v5e / v6e: 128 MiB physical
        vmem_limit, tm_max = 96 * 1024 * 1024, 512

    # v6e/v7x MXU is 2x256x256 -> 256-aligned feature dims; v5e (4x128^2) is fine at 128.
    feature_multiple = 256 if ("v6" in kind or "v7" in kind) else 128
    return vmem_limit, tm_max, feature_multiple


def seqskip_kernel(x_ref, w1_ref, b1_ref, w2_ref, b2_ref, o_ref, acc_ref):
    """One (row-tile, H-chunk) grid step of y = (x@W1+b1)@W2 + b2 + x."""
    k = pl.program_id(1)

    @pl.when(k == 0)
    def _():
        acc_ref[...] = jnp.zeros_like(acc_ref)

    x = x_ref[...]                                   # (tm, Dp) f32, also used for the residual
    # m1 chunk: bf16 MXU inputs, f32 accumulate; bias folded into the same expression so only
    # the bf16 copy of h stays live.
    h = (jnp.dot(x.astype(w1_ref.dtype), w1_ref[...],
                 preferred_element_type=jnp.float32) + b1_ref[...]).astype(w2_ref.dtype)
    # m2 chunk, accumulated over H chunks in f32.
    acc_ref[...] += jnp.dot(h, w2_ref[...], preferred_element_type=jnp.float32)

    @pl.when(k == pl.num_programs(1) - 1)
    def _():
        # bias2 + skip connection once the full H reduction is done.
        o_ref[...] = (acc_ref[...] + b2_ref[...] + x).astype(o_ref.dtype)


def prepare_seqskip_params(w1, b1, w2, b2, *, matmul_dtype=jnp.bfloat16, feature_multiple=None):
    """Pad to lane-dense feature dims and cast weights to the MXU dtype ONCE (not per call).

    Zero padding is numerically exact for the valid region of the output.
    """
    D, H = w1.shape
    assert w2.shape == (H, D) and b1.shape == (H,) and b2.shape == (D,)
    if feature_multiple is None:
        feature_multiple = _tpu_budget()[2]
    Dp = _round_up(D, feature_multiple)
    Hp = _round_up(H, feature_multiple)
    return {
        "w1": jnp.pad(w1, ((0, Dp - D), (0, Hp - H))).astype(matmul_dtype),
        "b1": jnp.pad(b1.astype(jnp.float32), (0, Hp - H)).reshape(1, Hp),
        "w2": jnp.pad(w2, ((0, Hp - H), (0, Dp - D))).astype(matmul_dtype),
        "b2": jnp.pad(b2.astype(jnp.float32), (0, Dp - D)).reshape(1, Dp),
    }


@functools.partial(
    jax.jit,
    static_argnames=("tm_max", "th_max", "vmem_limit_bytes", "single_buffer_invariants"),
)
def seqskip_apply(x, params, *, tm_max=256, th_max=1024,
                  vmem_limit_bytes=48 * 1024 * 1024, single_buffer_invariants=True):
    """y = (x @ W1 + b1) @ W2 + b2 + x with pre-prepared (padded, bf16) parameters."""
    N, D = x.shape
    w1_p, b1_p, w2_p, b2_p = params["w1"], params["b1"], params["w2"], params["b2"]
    Dp, Hp = w1_p.shape
    assert w2_p.shape == (Hp, Dp) and D <= Dp

    # Balanced row tiling: cap at tm_max, <8 padded rows per tile, and >=2 row steps when N
    # allows (keeps v7x's two TensorCores and the DMA pipeline busy).
    nt_rows = max(pl.cdiv(N, tm_max), min(2, pl.cdiv(N, 8)))
    tm = _round_up(pl.cdiv(N, nt_rows), 8)
    Np = nt_rows * tm

    # H (contraction) chunking: largest 128-aligned divisor of Hp that is <= th_max, so the
    # (tm, th) intermediate stays bounded and W1/W2 stream instead of needing full residency.
    th = Hp
    if Hp > th_max:
        th = th_max - th_max % 128
        while Hp % th:
            th -= 128
    nt_h = Hp // th

    # Skip the x pad / output slice entirely when shapes are already aligned (common prod case).
    if Np != N or Dp != D:
        x_p = jnp.pad(x, ((0, Np - N), (0, Dp - D)))
    else:
        x_p = x

    # Grid-invariant operands don't benefit from double buffering -> single-buffer them.
    inv = {"pipeline_mode": pl.Buffered(1)} if single_buffer_invariants else {}
    if nt_h == 1:
        w1_spec = pl.BlockSpec((Dp, th), lambda i, k: (0, 0), **inv)
        b1_spec = pl.BlockSpec((1, th), lambda i, k: (0, 0), **inv)
        w2_spec = pl.BlockSpec((th, Dp), lambda i, k: (0, 0), **inv)
    else:
        w1_spec = pl.BlockSpec((Dp, th), lambda i, k: (0, k))
        b1_spec = pl.BlockSpec((1, th), lambda i, k: (0, k))
        w2_spec = pl.BlockSpec((th, Dp), lambda i, k: (k, 0))
    b2_spec = pl.BlockSpec((1, Dp), lambda i, k: (0, 0), **inv)

    cost = pl.CostEstimate(
        flops=4 * Np * Dp * Hp,                                   # two matmuls
        transcendentals=0,
        bytes_accessed=2 * Np * Dp * 4 + 2 * Dp * Hp * 2 + (Hp + Dp) * 4,
    )

    out_p = pl.pallas_call(
        seqskip_kernel,
        out_shape=jax.ShapeDtypeStruct((Np, Dp), x.dtype),
        grid_spec=pltpu.PrefetchScalarGridSpec(
            num_scalar_prefetch=0,
            grid=(nt_rows, nt_h),
            in_specs=[
                pl.BlockSpec((tm, Dp), lambda i, k: (i, 0)),      # x tile (resident across k)
                w1_spec, b1_spec, w2_spec, b2_spec,
            ],
            out_specs=pl.BlockSpec((tm, Dp), lambda i, k: (i, 0)),
            scratch_shapes=[pltpu.VMEM((tm, Dp), jnp.float32)],   # f32 accumulator
        ),
        compiler_params=pltpu.CompilerParams(
            dimension_semantics=("parallel", "arbitrary"),
            vmem_limit_bytes=vmem_limit_bytes,
        ),
        cost_estimate=cost,
    )(x_p, w1_p, b1_p, w2_p, b2_p)

    if Np != N or Dp != D:
        return out_p[:N, :D]
    return out_p


def seqskip(x, w1, b1, w2, b2, *, params=None):
    """Convenience wrapper: y = (x @ w1 + b1) @ w2 + b2 + x (weights stored as PyTorch W.T)."""
    vmem_limit, tm_max, _ = _tpu_budget()
    if params is None:
        params = prepare_seqskip_params(w1, b1, w2, b2)
    try:
        return seqskip_apply(x, params, tm_max=tm_max, vmem_limit_bytes=vmem_limit,
                             single_buffer_invariants=True)
    except Exception:
        # Fallback if this jax/jaxlib rejects pl.Buffered(1) on invariant operands.
        return seqskip_apply(x, params, tm_max=tm_max, vmem_limit_bytes=vmem_limit,
                             single_buffer_invariants=False)


if __name__ == "__main__":
    batch, seq, D, H = 2, 8, 32, 64
    N = batch * seq

    key = jax.random.PRNGKey(0)
    kx, kw1, kb1, kw2, kb2 = jax.random.split(key, 5)

    x = jax.random.normal(kx, (N, D), dtype=jnp.float32)
    # deterministic synthetic parameters (shapes follow nn.Linear(D,H) / nn.Linear(H,D))
    w1 = jax.random.normal(kw1, (D, H), dtype=jnp.float32) * 0.05
    b1 = jax.random.normal(kb1, (H,), dtype=jnp.float32) * 0.05
    w2 = jax.random.normal(kw2, (H, D), dtype=jnp.float32) * 0.05
    b2 = jax.random.normal(kb2, (D,), dtype=jnp.float32) * 0.05

    # Weight prep (pad + bf16 cast) hoisted out of the per-call path.
    params = prepare_seqskip_params(w1, b1, w2, b2)
    out = jax.block_until_ready(seqskip(x, w1, b1, w2, b2, params=params))

    # Reference 1: same math as the kernel (bf16 MXU inputs, f32 accumulate / bias / residual).
    h_ref = jnp.dot(x.astype(jnp.bfloat16), w1.astype(jnp.bfloat16),
                    preferred_element_type=jnp.float32) + b1
    ref_bf16 = jnp.dot(h_ref.astype(jnp.bfloat16), w2.astype(jnp.bfloat16),
                       preferred_element_type=jnp.float32) + b2 + x
    assert jnp.allclose(out, ref_bf16, atol=1e-4, rtol=1e-4), "mismatch vs bf16-input reference"

    # Reference 2: pure-f32 forward pass (sanity check, looser tolerance for bf16 inputs).
    ref_f32 = (x @ w1 + b1) @ w2 + b2 + x
    assert jnp.allclose(out, ref_f32, atol=2e-2, rtol=2e-2), "mismatch vs f32 reference"

    print("KERNEL_OK")
</pallas_src>

<mosaic_0001>
module attributes {stable_mosaic.version = 11 : i64} {
  func.func @seqskip_kernel(%arg0: i32, %arg1: i32, %arg2: memref<8x128xf32, #tpu.memory_space<vmem>>, %arg3: memref<128x128xbf16, #tpu.memory_space<vmem>>, %arg4: memref<1x128xf32, #tpu.memory_space<vmem>>, %arg5: memref<128x128xbf16, #tpu.memory_space<vmem>>, %arg6: memref<1x128xf32, #tpu.memory_space<vmem>>, %arg7: memref<8x128xf32, #tpu.memory_space<vmem>>, %arg8: memref<8x128xf32, #tpu.memory_space<vmem>>) attributes {dimension_semantics = [#tpu.dimension_semantics<parallel>, #tpu.dimension_semantics<arbitrary>], iteration_bounds = array<i64: 2, 1>, scalar_prefetch = 0 : i64, scratch_operands = 1 : i64, tpu.core_type = #tpu.core_type<tc>, window_params = [{transform_indices = @transform_0, window_bounds = array<i64: 8, 128>}, {pipeline_mode = #tpu.pipeline_mode<synchronous>, transform_indices = @transform_1, window_bounds = array<i64: 128, 128>}, {pipeline_mode = #tpu.pipeline_mode<synchronous>, transform_indices = @transform_2, window_bounds = array<i64: 1, 128>}, {pipeline_mode = #tpu.pipeline_mode<synchronous>, transform_indices = @transform_3, window_bounds = array<i64: 128, 128>}, {pipeline_mode = #tpu.pipeline_mode<synchronous>, transform_indices = @transform_4, window_bounds = array<i64: 1, 128>}, {transform_indices = @transform_5, window_bounds = array<i64: 8, 128>}]} {
    %c0_i32 = arith.constant 0 : i32
    %0 = arith.cmpi eq, %arg1, %c0_i32 : i32
    %1 = arith.extui %0 : i1 to i32
    %c0_i32_0 = arith.constant 0 : i32
    %2 = arith.cmpi ne, %1, %c0_i32_0 : i32
    scf.if %2 {
      %cst_15 = arith.constant 0.000000e+00 : f32
      %19 = vector.broadcast %cst_15 : f32 to vector<8x128xf32>
      %c0_16 = arith.constant 0 : index
      %c0_17 = arith.constant 0 : index
      %20 = vector.load %arg8[%c0_16, %c0_17] : memref<8x128xf32, #tpu.memory_space<vmem>>, vector<8x128xf32>
      tpu.vector_store %arg8[%c0_16, %c0_17], %19 {strides = array<i32>} : memref<8x128xf32, #tpu.memory_space<vmem>>, vector<8x128xf32>,
    } else {
    }
    %c0 = arith.constant 0 : index
    %c0_1 = arith.constant 0 : index
    %3 = vector.load %arg2[%c0, %c0_1] : memref<8x128xf32, #tpu.memory_space<vmem>>, vector<8x128xf32>
    %4 = arith.truncf %3 : vector<8x128xf32> to vector<8x128xbf16>
    %c0_2 = arith.constant 0 : index
    %c0_3 = arith.constant 0 : index
    %5 = vector.load %arg3[%c0_2, %c0_3] : memref<128x128xbf16, #tpu.memory_space<vmem>>, vector<128x128xbf16>
    %cst = arith.constant dense<0.000000e+00> : vector<8x128xf32>
    %6 = tpu.matmul %4, %5, %cst {dimension_numbers = #tpu.dot_dimension_numbers<[1], [0], [0], [1], [0, 0, 1, 1], [], []>} : vector<8x128xbf16>, vector<128x128xbf16>, vector<8x128xf32> -> vector<8x128xf32>
    %c0_4 = arith.constant 0 : index
    %c0_5 = arith.constant 0 : index
    %7 = vector.load %arg4[%c0_4, %c0_5] : memref<1x128xf32, #tpu.memory_space<vmem>>, vector<1x128xf32>
    %8 = vector.broadcast %7 : vector<1x128xf32> to vector<8x128xf32>
    %9 = arith.addf %6, %8 : vector<8x128xf32>
    %10 = arith.truncf %9 : vector<8x128xf32> to vector<8x128xbf16>
    %c0_6 = arith.constant 0 : index
    %c0_7 = arith.constant 0 : index
    %11 = vector.load %arg8[%c0_6, %c0_7] : memref<8x128xf32, #tpu.memory_space<vmem>>, vector<8x128xf32>
    %c0_8 = arith.constant 0 : index
    %c0_9 = arith.constant 0 : index
    %12 = vector.load %arg5[%c0_8, %c0_9] : memref<128x128xbf16, #tpu.memory_space<vmem>>, vector<128x128xbf16>
    %cst_10 = arith.constant dense<0.000000e+00> : vector<8x128xf32>
    %13 = tpu.matmul %10, %12, %cst_10 {dimension_numbers = #tpu.dot_dimension_numbers<[1], [0], [0], [1], [0, 0, 1, 1], [], []>} : vector<8x128xbf16>, vector<128x128xbf16>, vector<8x128xf32> -> vector<8x128xf32>
    %14 = arith.addf %11, %13 : vector<8x128xf32>
    %c0_11 = arith.constant 0 : index
    %c0_12 = arith.constant 0 : index
    %15 = vector.load %arg8[%c0_11, %c0_12] : memref<8x128xf32, #tpu.memory_space<vmem>>, vector<8x128xf32>
    tpu.vector_store %arg8[%c0_11, %c0_12], %14 {strides = array<i32>} : memref<8x128xf32, #tpu.memory_space<vmem>>, vector<8x128xf32>,
    %c0_i32_13 = arith.constant 0 : i32
    %16 = arith.cmpi eq, %arg1, %c0_i32_13 : i32
    %17 = arith.extui %16 : i1 to i32
    %c0_i32_14 = arith.constant 0 : i32
    %18 = arith.cmpi ne, %17, %c0_i32_14 : i32
    scf.if %18 {
      %c0_15 = arith.constant 0 : index
      %c0_16 = arith.constant 0 : index
      %19 = vector.load %arg8[%c0_15, %c0_16] : memref<8x128xf32, #tpu.memory_space<vmem>>, vector<8x128xf32>
      %c0_17 = arith.constant 0 : index
      %c0_18 = arith.constant 0 : index
      %20 = vector.load %arg6[%c0_17, %c0_18] : memref<1x128xf32, #tpu.memory_space<vmem>>, vector<1x128xf32>
      %21 = vector.broadcast %20 : vector<1x128xf32> to vector<8x128xf32>
      %22 = arith.addf %19, %21 : vector<8x128xf32>
      %23 = arith.addf %22, %3 : vector<8x128xf32>
      %c0_19 = arith.constant 0 : index
      %c0_20 = arith.constant 0 : index
      %24 = vector.load %arg7[%c0_19, %c0_20] : memref<8x128xf32, #tpu.memory_space<vmem>>, vector<8x128xf32>
      tpu.vector_store %arg7[%c0_19, %c0_20], %23 {strides = array<i32>} : memref<8x128xf32, #tpu.memory_space<vmem>>, vector<8x128xf32>,
    } else {
    }
    return
  }
  func.func @transform_0(%arg0: i32, %arg1: i32) -> (i32, i32) {
    %c0_i32 = arith.constant 0 : i32
    %c0_i32_0 = arith.constant 0 : i32
    return %arg0, %c0_i32 : i32, i32
  }
  func.func @transform_1(%arg0: i32, %arg1: i32) -> (i32, i32) {
    %c0_i32 = arith.constant 0 : i32
    %c0_i32_0 = arith.constant 0 : i32
    %c0_i32_1 = arith.constant 0 : i32
    return %c0_i32, %c0_i32_0 : i32, i32
  }
  func.func @transform_2(%arg0: i32, %arg1: i32) -> (i32, i32) {
    %c0_i32 = arith.constant 0 : i32
    %c0_i32_0 = arith.constant 0 : i32
    %c0_i32_1 = arith.constant 0 : i32
    return %c0_i32, %c0_i32_0 : i32, i32
  }
  func.func @transform_3(%arg0: i32, %arg1: i32) -> (i32, i32) {
    %c0_i32 = arith.constant 0 : i32
    %c0_i32_0 = arith.constant 0 : i32
    %c0_i32_1 = arith.constant 0 : i32
    return %c0_i32, %c0_i32_0 : i32, i32
  }
  func.func @transform_4(%arg0: i32, %arg1: i32) -> (i32, i32) {
    %c0_i32 = arith.constant 0 : i32
    %c0_i32_0 = arith.constant 0 : i32
    %c0_i32_1 = arith.constant 0 : i32
    return %c0_i32, %c0_i32_0 : i32, i32
  }
  func.func @transform_5(%arg0: i32, %arg1: i32) -> (i32, i32) {
    %c0_i32 = arith.constant 0 : i32
    %c0_i32_0 = arith.constant 0 : i32
    return %arg0, %c0_i32 : i32, i32
  }
}

module attributes {stable_mosaic.version = 11 : i64} {
  func.func @seqskip_kernel(%arg0: i32, %arg1: i32, %arg2: memref<8x128xf32, #tpu.memory_space<vmem>>, %arg3: memref<128x128xbf16, #tpu.memory_space<vmem>>, %arg4: memref<1x128xf32, #tpu.memory_space<vmem>>, %arg5: memref<128x128xbf16, #tpu.memory_space<vmem>>, %arg6: memref<1x128xf32, #tpu.memory_space<vmem>>, %arg7: memref<8x128xf32, #tpu.memory_space<vmem>>, %arg8: memref<8x128xf32, #tpu.memory_space<vmem>>) attributes {dimension_semantics = [#tpu.dimension_semantics<parallel>, #tpu.dimension_semantics<arbitrary>], iteration_bounds = array<i64: 2, 1>, scalar_prefetch = 0 : i64, scratch_operands = 1 : i64, tpu.core_type = #tpu.core_type<tc>, window_params = [{transform_indices = @transform_0, window_bounds = array<i64: 8, 128>}, {pipeline_mode = #tpu.pipeline_mode<synchronous>, transform_indices = @transform_1, window_bounds = array<i64: 128, 128>}, {pipeline_mode = #tpu.pipeline_mode<synchronous>, transform_indices = @transform_2, window_bounds = array<i64: 1, 128>}, {pipeline_mode = #tpu.pipeline_mode<synchronous>, transform_indices = @transform_3, window_bounds = array<i64: 128, 128>}, {pipeline_mode = #tpu.pipeline_mode<synchronous>, transform_indices = @transform_4, window_bounds = array<i64: 1, 128>}, {transform_indices = @transform_5, window_bounds = array<i64: 8, 128>}]} {
    %c0_i32 = arith.constant 0 : i32
    %0 = arith.cmpi eq, %arg1, %c0_i32 : i32
    %1 = arith.extui %0 : i1 to i32
    %c0_i32_0 = arith.constant 0 : i32
    %2 = arith.cmpi ne, %1, %c0_i32_0 : i32
    scf.if %2 {
      %cst_15 = arith.constant 0.000000e+00 : f32
      %19 = vector.broadcast %cst_15 : f32 to vector<8x128xf32>
      %c0_16 = arith.constant 0 : index
      %c0_17 = arith.constant 0 : index
      %20 = vector.load %arg8[%c0_16, %c0_17] : memref<8x128xf32, #tpu.memory_space<vmem>>, vector<8x128xf32>
      tpu.vector_store %arg8[%c0_16, %c0_17], %19 {strides = array<i32>} : memref<8x128xf32, #tpu.memory_space<vmem>>, vector<8x128xf32>,
    } else {
    }
    %c0 = arith.constant 0 : index
    %c0_1 = arith.constant 0 : index
    %3 = vector.load %arg2[%c0, %c0_1] : memref<8x128xf32, #tpu.memory_space<vmem>>, vector<8x128xf32>
    %4 = arith.truncf %3 : vector<8x128xf32> to vector<8x128xbf16>
    %c0_2 = arith.constant 0 : index
    %c0_3 = arith.constant 0 : index
    %5 = vector.load %arg3[%c0_2, %c0_3] : memref<128x128xbf16, #tpu.memory_space<vmem>>, vector<128x128xbf16>
    %cst = arith.constant dense<0.000000e+00> : vector<8x128xf32>
    %6 = tpu.matmul %4, %5, %cst {dimension_numbers = #tpu.dot_dimension_numbers<[1], [0], [0], [1], [0, 0, 1, 1], [], []>} : vector<8x128xbf16>, vector<128x128xbf16>, vector<8x128xf32> -> vector<8x128xf32>
    %c0_4 = arith.constant 0 : index
    %c0_5 = arith.constant 0 : index
    %7 = vector.load %arg4[%c0_4, %c0_5] : memref<1x128xf32, #tpu.memory_space<vmem>>, vector<1x128xf32>
    %8 = vector.broadcast %7 : vector<1x128xf32> to vector<8x128xf32>
    %9 = arith.addf %6, %8 : vector<8x128xf32>
    %10 = arith.truncf %9 : vector<8x128xf32> to vector<8x128xbf16>
    %c0_6 = arith.constant 0 : index
    %c0_7 = arith.constant 0 : index
    %11 = vector.load %arg8[%c0_6, %c0_7] : memref<8x128xf32, #tpu.memory_space<vmem>>, vector<8x128xf32>
    %c0_8 = arith.constant 0 : index
    %c0_9 = arith.constant 0 : index
    %12 = vector.load %arg5[%c0_8, %c0_9] : memref<128x128xbf16, #tpu.memory_space<vmem>>, vector<128x128xbf16>
    %cst_10 = arith.constant dense<0.000000e+00> : vector<8x128xf32>
    %13 = tpu.matmul %10, %12, %cst_10 {dimension_numbers = #tpu.dot_dimension_numbers<[1], [0], [0], [1], [0, 0, 1, 1], [], []>} : vector<8x128xbf16>, vector<128x128xbf16>, vector<8x128xf32> -> vector<8x128xf32>
    %14 = arith.addf %11, %13 : vector<8x128xf32>
    %c0_11 = arith.constant 0 : index
    %c0_12 = arith.constant 0 : index
    %15 = vector.load %arg8[%c0_11, %c0_12] : memref<8x128xf32, #tpu.memory_space<vmem>>, vector<8x128xf32>
    tpu.vector_store %arg8[%c0_11, %c0_12], %14 {strides = array<i32>} : memref<8x128xf32, #tpu.memory_space<vmem>>, vector<8x128xf32>,
    %c0_i32_13 = arith.constant 0 : i32
    %16 = arith.cmpi eq, %arg1, %c0_i32_13 : i32
    %17 = arith.extui %16 : i1 to i32
    %c0_i32_14 = arith.constant 0 : i32
    %18 = arith.cmpi ne, %17, %c0_i32_14 : i32
    scf.if %18 {
      %c0_15 = arith.constant 0 : index
      %c0_16 = arith.constant 0 : index
      %19 = vector.load %arg8[%c0_15, %c0_16] : memref<8x128xf32, #tpu.memory_space<vmem>>, vector<8x128xf32>
      %c0_17 = arith.constant 0 : index
      %c0_18 = arith.constant 0 : index
      %20 = vector.load %arg6[%c0_17, %c0_18] : memref<1x128xf32, #tpu.memory_space<vmem>>, vector<1x128xf32>
      %21 = vector.broadcast %20 : vector<1x128xf32> to vector<8x128xf32>
      %22 = arith.addf %19, %21 : vector<8x128xf32>
      %23 = arith.addf %22, %3 : vector<8x128xf32>
      %c0_19 = arith.constant 0 : index
      %c0_20 = arith.constant 0 : index
      %24 = vector.load %arg7[%c0_19, %c0_20] : memref<8x128xf32, #tpu.memory_space<vmem>>, vector<8x128xf32>
      tpu.vector_store %arg7[%c0_19, %c0_20], %23 {strides = array<i32>} : memref<8x128xf32, #tpu.memory_space<vmem>>, vector<8x128xf32>,
    } else {
    }
    return
  }
  func.func @transform_0(%arg0: i32, %arg1: i32) -> (i32, i32) {
    %c0_i32 = arith.constant 0 : i32
    %c0_i32_0 = arith.constant 0 : i32
    return %arg0, %c0_i32 : i32, i32
  }
  func.func @transform_1(%arg0: i32, %arg1: i32) -> (i32, i32) {
    %c0_i32 = arith.constant 0 : i32
    %c0_i32_0 = arith.constant 0 : i32
    %c0_i32_1 = arith.constant 0 : i32
    return %c0_i32, %c0_i32_0 : i32, i32
  }
  func.func @transform_2(%arg0: i32, %arg1: i32) -> (i32, i32) {
    %c0_i32 = arith.constant 0 : i32
    %c0_i32_0 = arith.constant 0 : i32
    %c0_i32_1 = arith.constant 0 : i32
    return %c0_i32, %c0_i32_0 : i32, i32
  }
  func.func @transform_3(%arg0: i32, %arg1: i32) -> (i32, i32) {
    %c0_i32 = arith.constant 0 : i32
    %c0_i32_0 = arith.constant 0 : i32
    %c0_i32_1 = arith.constant 0 : i32
    return %c0_i32, %c0_i32_0 : i32, i32
  }
  func.func @transform_4(%arg0: i32, %arg1: i32) -> (i32, i32) {
    %c0_i32 = arith.constant 0 : i32
    %c0_i32_0 = arith.constant 0 : i32
    %c0_i32_1 = arith.constant 0 : i32
    return %c0_i32, %c0_i32_0 : i32, i32
  }
  func.func @transform_5(%arg0: i32, %arg1: i32) -> (i32, i32) {
    %c0_i32 = arith.constant 0 : i32
    %c0_i32_0 = arith.constant 0 : i32
    return %arg0, %c0_i32 : i32, i32
  }
}

</mosaic_0001>

<llo_original>
// kernel: seqskip_apply.1
$region0: #{seqskip_apply.1}
  #allocation0 [shape = 'u32[]', space=smem, size = 0x4, offset = 0x4, fixed_abs, tag = 'smem constant byte address 0x4 - core index']
  #allocation1 [shape = 'u32[144,128]{1,0:T(1,128)}', space=vmem, size = 0x12000, scoped, tag = 'internal scratch']
  #allocation2 [shape = 'f32[8,128]{1,0:T(8,128)}', space=vmem, size = 0x1000, scoped, tag = 'scratch operand']
  %s0 = inlined_call_operand.hbm [shape: f32[16,128], index: 0, kind: input, shape index: {}]
  %s1 = inlined_call_operand.hbm [shape: bf16[128,128], index: 1, kind: input, shape index: {}]
  %s2 = inlined_call_operand.hbm [shape: f32[1,128], index: 2, kind: input, shape index: {}]
  %s3 = inlined_call_operand.hbm [shape: bf16[128,128], index: 3, kind: input, shape index: {}]
  %s4 = inlined_call_operand.hbm [shape: f32[1,128], index: 4, kind: input, shape index: {}]
  %s5 = inlined_call_operand.hbm [shape: f32[16,128], index: 5, kind: output, shape index: {}]
  %s6 = sld [smem:[#allocation0]]
  $region81: #{seqskip_apply.1} parent=0
    _
  %s8 = ssub.s32 1, %s6
  %s9 = scalar_select 0, %s8, %s6
  $region1: #{seqskip_apply.1} parent=0
    #allocation3 [shape = 'u8[8192]{0}', space=vmem, size = 0x2000, scoped, tag = 'input window, operand 0']
    #allocation4 [shape = 's32[2]{0}', space=sflag, size = 0x8, scoped, tag = 'scoped memory for seqskip_apply.1']
    #allocation5 [shape = 's32[2]{0}', space=sflag, size = 0x8, scoped, tag = 'scoped memory for seqskip_apply.1']
    #allocation6 [shape = 'u8[32768]{0}', space=vmem, size = 0x8000, scoped, tag = 'input window, operand 1, single buffered']
    #allocation7 [shape = 's32[1]{0}', space=sflag, size = 0x4, scoped, tag = 'scoped memory for seqskip_apply.1']
    #allocation8 [shape = 'u8[512]{0}', space=vmem, size = 0x400, scoped, tag = 'input window, operand 2, single buffered']
    #allocation9 [shape = 'u8[32768]{0}', space=vmem, size = 0x8000, scoped, tag = 'input window, operand 3, single buffered']
    #allocation10 [shape = 's32[1]{0}', space=sflag, size = 0x4, scoped, tag = 'scoped memory for seqskip_apply.1']
    #allocation11 [shape = 'u8[512]{0}', space=vmem, size = 0x400, scoped, tag = 'input window, operand 4, single buffered']
    #allocation12 [shape = 'u8[8192]{0}', space=vmem, size = 0x2000, scoped, tag = 'output window, operand 0']
    %10 = vsyncpa [#allocation4], 0
    %s11 = scalar_lea.sflag [#allocation4], 1
    %12 = vsyncpa %s11, 0
    %13 = vsyncpa [#allocation7], 0
    %14 = vsyncpa [#allocation10], 0
    %15 = vsyncpa [#allocation5], 0
    %s16 = scalar_lea.sflag [#allocation5], 1
    %17 = vsyncpa %s16, 0
    loop: start=0, step=1, limit=4
    $region2: #{seqskip_apply.1} parent=1 // loop_pre_header
      _
    $region3: #{seqskip_apply.1} parent=1 // loop_header
      %s19 = sphi 0, %s23
      %p20 = scmp.ge.s32.totalorder %s19, 4
      %s26 = sphi 0, %s38
      %s27 = sphi 0, %s34
      %s28 = sphi 0, %s26
      %s29 = sphi 0, %s27
      %s30 = sphi 0, %s28
      %s31 = sphi 0, %s29
      %s41 = sphi 0, %s43
      %s44 = sphi 0, %s41
      %s45 = sphi 0, %s44
      %s61 = sphi 0, %s45
      %s65 = sphi 0, %s65
      %s67 = sphi 0, %s65
      %s68 = sphi 0, %s67
      %s82 = sphi 0, %s68
      %s86 = sphi 0, %s86
      %s88 = sphi 0, %s86
      %s89 = sphi 0, %s88
      %s103 = sphi 0, %s89
      %s107 = sphi 0, %s107
      %s109 = sphi 0, %s107
      %s110 = sphi 0, %s109
      %s124 = sphi 0, %s110
      %s128 = sphi 0, %s128
      %s130 = sphi 0, %s128
      %s131 = sphi 0, %s130
      %s145 = sphi 0, %s131
      %s151 = sphi 0, %s153
      %s154 = sphi 0, %s151
      %s155 = sphi 0, %s154
      %s171 = sphi 0, %s155
    $region4: #{seqskip_apply.1} parent=1 // loop_header_branch
      %22 = sbr.rel (%p20) target = $region8
    $region5: #{seqskip_apply.1} parent=1 // loop_body
      %s24 = ssub.s32 %s19, 1
      %s25 = ssub.s32 %s19, 2
      %s32 = sadd.s32 1, %s27
      %p33 = scmp.ge.s32.totalorder %s32, 1
      %s34 = scalar_select %p33, 0, %s32
      %s35 = sadd.s32 1, %s26
      %s36 = scalar_select %p33, %s35, %s26
      %p37 = scmp.ge.s32.totalorder %s36, 2
      %s38 = scalar_select %p37, 0, %s36
      %s39 = ssub.s32 %s26, %s38
      %p40 = scmp.eq.s32.totalorder %s39, 0
      %s42 = sadd.s32 %s41, 1
      %s43 = scalar_select %p40, %s41, %s42
      %p46 = pneg %p40
      %p47 = scmp.eq.s32.totalorder %s19, 1
      %p48 = por %p46, %p47
      %p49 = scmp.ne.s32.totalorder %s41, %s44
      %p50 = scmp.eq.s32.totalorder %s19, 0
      %p51 = por %p49, %p50
      %p52 = scmp.ne.s32.totalorder %s41, %s44
      %p53 = scmp.eq.s32.totalorder %s24, 1
      %p54 = por %p52, %p53
      %p55 = scmp.ne.s32.totalorder %s44, %s45
      %p56 = scmp.eq.s32.totalorder %s24, 0
      %p57 = por %p55, %p56
      %p58 = scmp.ne.s32.totalorder %s44, %s45
      %p59 = scmp.eq.s32.totalorder %s25, 1
      %p60 = por %p58, %p59
      %p62 = scmp.ne.s32.totalorder %s45, %s61
      %p63 = scmp.eq.s32.totalorder %s25, 0
      %p64 = por %p62, %p63
      %s66 = sadd.s32 %s65, 1
      %p69 = scmp.eq.s32.totalorder %s19, 1
      %p70 = scmp.ne.s32.totalorder %s65, %s67
      %p71 = scmp.eq.s32.totalorder %s19, 0
      %p72 = por %p70, %p71
      %p73 = scmp.ne.s32.totalorder %s65, %s67
      %p74 = scmp.eq.s32.totalorder %s24, 1
      %p75 = por %p73, %p74
      %p76 = scmp.ne.s32.totalorder %s67, %s68
      %p77 = scmp.eq.s32.totalorder %s24, 0
      %p78 = por %p76, %p77
      %p79 = scmp.ne.s32.totalorder %s67, %s68
      %p80 = scmp.eq.s32.totalorder %s25, 1
      %p81 = por %p79, %p80
      %p83 = scmp.ne.s32.totalorder %s68, %s82
      %p84 = scmp.eq.s32.totalorder %s25, 0
      %p85 = por %p83, %p84
      %s87 = sadd.s32 %s86, 1
      %p90 = scmp.eq.s32.totalorder %s19, 1
      %p91 = scmp.ne.s32.totalorder %s86, %s88
      %p92 = scmp.eq.s32.totalorder %s19, 0
      %p93 = por %p91, %p92
      %p94 = scmp.ne.s32.totalorder %s86, %s88
      %p95 = scmp.eq.s32.totalorder %s24, 1
      %p96 = por %p94, %p95
      %p97 = scmp.ne.s32.totalorder %s88, %s89
      %p98 = scmp.eq.s32.totalorder %s24, 0
      %p99 = por %p97, %p98
      %p100 = scmp.ne.s32.totalorder %s88, %s89
      %p101 = scmp.eq.s32.totalorder %s25, 1
      %p102 = por %p100, %p101
      %p104 = scmp.ne.s32.totalorder %s89, %s103
      %p105 = scmp.eq.s32.totalorder %s25, 0
      %p106 = por %p104, %p105
      %s108 = sadd.s32 %s107, 1
      %p111 = scmp.eq.s32.totalorder %s19, 1
      %p112 = scmp.ne.s32.totalorder %s107, %s109
      %p113 = scmp.eq.s32.totalorder %s19, 0
      %p114 = por %p112, %p113
      %p115 = scmp.ne.s32.totalorder %s107, %s109
      %p116 = scmp.eq.s32.totalorder %s24, 1
      %p117 = por %p115, %p116
      %p118 = scmp.ne.s32.totalorder %s109, %s110
      %p119 = scmp.eq.s32.totalorder %s24, 0
      %p120 = por %p118, %p119
      %p121 = scmp.ne.s32.totalorder %s109, %s110
      %p122 = scmp.eq.s32.totalorder %s25, 1
      %p123 = por %p121, %p122
      %p125 = scmp.ne.s32.totalorder %s110, %s124
      %p126 = scmp.eq.s32.totalorder %s25, 0
      %p127 = por %p125, %p126
      %s129 = sadd.s32 %s128, 1
      %p132 = scmp.eq.s32.totalorder %s19, 1
      %p133 = scmp.ne.s32.totalorder %s128, %s130
      %p134 = scmp.eq.s32.totalorder %s19, 0
      %p135 = por %p133, %p134
      %p136 = scmp.ne.s32.totalorder %s128, %s130
      %p137 = scmp.eq.s32.totalorder %s24, 1
      %p138 = por %p136, %p137
      %p139 = scmp.ne.s32.totalorder %s130, %s131
      %p140 = scmp.eq.s32.totalorder %s24, 0
      %p141 = por %p139, %p140
      %p142 = scmp.ne.s32.totalorder %s130, %s131
      %p143 = scmp.eq.s32.totalorder %s25, 1
      %p144 = por %p142, %p143
      %p146 = scmp.ne.s32.totalorder %s131, %s145
      %p147 = scmp.eq.s32.totalorder %s25, 0
      %p148 = por %p146, %p147
      %s149 = ssub.s32 %s26, %s38
      %p150 = scmp.eq.s32.totalorder %s149, 0
      %s152 = sadd.s32 %s151, 1
      %s153 = scalar_select %p150, %s151, %s152
      %p156 = pneg %p150
      %p157 = scmp.eq.s32.totalorder %s19, 1
      %p158 = por %p156, %p157
      %p159 = scmp.ne.s32.totalorder %s151, %s154
      %p160 = scmp.eq.s32.totalorder %s19, 0
      %p161 = por %p159, %p160
      %p162 = scmp.ne.s32.totalorder %s151, %s154
      %p163 = scmp.eq.s32.totalorder %s24, 1
      %p164 = por %p162, %p163
      %p165 = scmp.ne.s32.totalorder %s154, %s155
      %p166 = scmp.eq.s32.totalorder %s24, 0
      %p167 = por %p165, %p166
      %p168 = scmp.ne.s32.totalorder %s154, %s155
      %p169 = scmp.eq.s32.totalorder %s25, 1
      %p170 = por %p168, %p169
      %p172 = scmp.ne.s32.totalorder %s155, %s171
      %p173 = scmp.eq.s32.totalorder %s25, 0
      %p174 = por %p172, %p173
      %p175 = scmp.le.s32.totalorder 1, %s19
      %p176 = scmp.lt.s32.totalorder %s19, 3
      %p177 = pnand %p175, %p176
      %p178 = pneg %p177
      // Predicated region
      $region9: #{seqskip_apply.1} parent=5 // pred_check
        _
      $region10: #{seqskip_apply.1} parent=5 // pred_check_branch
        %180 = sbr.rel (%p177) target = $region12
      $region11: #{seqskip_apply.1} parent=5 // pred_region
        %s181 = ssub.s32 %s19, 1
        // Predicated region
        $region13: #{seqskip_apply.1} parent=11 // pred_check
          %p182 = pneg %p78
        $region14: #{seqskip_apply.1} parent=11 // pred_check_branch
          %184 = sbr.rel (%p182) target = $region16
        $region15: #{seqskip_apply.1} parent=11 // pred_region
          %s186 = ssub.s32 1024, 1024
          %187 = vsyncadd [#allocation7], %s186
          %s188 = sshll.u32 [#allocation6], 4
          %s189 = int_to_ptr.vmem [resolvable:$true] %s188
          %194 = dma.hbm_to_vmem [thread:$0]  %s1, 1024, %s189, [#allocation7], 64, 64, 4
        $region16: #{seqskip_apply.1} parent=11 // pred_fallthru
          _
        // Predicated region
        $region17: #{seqskip_apply.1} parent=11 // pred_check
          %p195 = pneg %p99
        $region18: #{seqskip_apply.1} parent=11 // pred_check_branch
          %197 = sbr.rel (%p195) target = $region20
        $region19: #{seqskip_apply.1} parent=11 // pred_region
          %s199 = ssub.s32 16, 16
          %200 = vsyncadd [#allocation7], %s199
          %s202 = sshll.u32 [#allocation8], 4
          %s203 = int_to_ptr.vmem [resolvable:$true] %s202
          %205 = dma.hbm_to_vmem [thread:$0]  %s2, 16, %s203, [#allocation7]
        $region20: #{seqskip_apply.1} parent=11 // pred_fallthru
          _
        // Predicated region
        $region21: #{seqskip_apply.1} parent=11 // pred_check
          %p206 = pneg %p120
        $region22: #{seqskip_apply.1} parent=11 // pred_check_branch
          %208 = sbr.rel (%p206) target = $region24
        $region23: #{seqskip_apply.1} parent=11 // pred_region
          %s210 = ssub.s32 1024, 1024
          %211 = vsyncadd [#allocation10], %s210
          %s212 = sshll.u32 [#allocation9], 4
          %s213 = int_to_ptr.vmem [resolvable:$true] %s212
          %218 = dma.hbm_to_vmem [thread:$0]  %s3, 1024, %s213, [#allocation10], 64, 64, 4
        $region24: #{seqskip_apply.1} parent=11 // pred_fallthru
          _
        // Predicated region
        $region25: #{seqskip_apply.1} parent=11 // pred_check
          %p219 = pneg %p141
        $region26: #{seqskip_apply.1} parent=11 // pred_check_branch
          %221 = sbr.rel (%p219) target = $region28
        $region27: #{seqskip_apply.1} parent=11 // pred_region
          %s223 = ssub.s32 16, 16
          %224 = vsyncadd [#allocation10], %s223
          %s226 = sshll.u32 [#allocation11], 4
          %s227 = int_to_ptr.vmem [resolvable:$true] %s226
          %229 = dma.hbm_to_vmem [thread:$0]  %s4, 16, %s227, [#allocation10]
        $region28: #{seqskip_apply.1} parent=11 // pred_fallthru
          _
      $region12: #{seqskip_apply.1} parent=5 // pred_fallthru
        _
      %p230 = scmp.lt.s32.totalorder %s19, 2
      // Predicated region
      $region29: #{seqskip_apply.1} parent=5 // pred_check
        %p231 = pneg %p230
      $region30: #{seqskip_apply.1} parent=5 // pred_check_branch
        %233 = sbr.rel (%p231) target = $region32
      $region31: #{seqskip_apply.1} parent=5 // pred_region
        // Predicated region
        $region33: #{seqskip_apply.1} parent=31 // pred_check
          %p234 = pneg %p51
        $region34: #{seqskip_apply.1} parent=31 // pred_check_branch
          %236 = sbr.rel (%p234) target = $region36
        $region35: #{seqskip_apply.1} parent=31 // pred_region
          %s237 = sand.u32 %s41, 1
          %s238 = scalar_lea.sflag [#allocation4], %s237
          %s239 = sand.u32 %s41, 1
          %s240 = smul.addr %s239, 8
          %s241 = scalar_lea.vmem [#allocation3], %s240
          %s243 = ssub.s32 128, 128
          %244 = vsyncadd %s238, %s243
          %s245 = smul.addr %s26, 128
          %s246 = scalar_lea.hbm %s0, %s245
          %s248 = sshll.u32 %s241, 4
          %s249 = int_to_ptr.vmem [resolvable:$true] %s248
          %251 = dma.hbm_to_vmem [thread:$0]  %s246, 128, %s249, %s238
        $region36: #{seqskip_apply.1} parent=31 // pred_fallthru
          _
      $region32: #{seqskip_apply.1} parent=5 // pred_fallthru
        _
      %p252 = scmp.le.s32.totalorder 1, %s19
      %p253 = scmp.lt.s32.totalorder %s19, 3
      %p254 = pnand %p252, %p253
      %p255 = pneg %p254
      // Predicated region
      $region37: #{seqskip_apply.1} parent=5 // pred_check
        _
      $region38: #{seqskip_apply.1} parent=5 // pred_check_branch
        %257 = sbr.rel (%p254) target = $region40
      $region39: #{seqskip_apply.1} parent=5 // pred_region
        %s258 = ssub.s32 %s19, 1
        %s259 = sand.u32 %s44, 1
        %s260 = scalar_lea.sflag [#allocation4], %s259
        %s261 = sand.u32 %s44, 1
        %s262 = smul.addr %s261, 8
        %s263 = scalar_lea.vmem [#allocation3], %s262
        // Predicated region
        $region41: #{seqskip_apply.1} parent=39 // pred_check
          %p264 = pneg %p57
        $region42: #{seqskip_apply.1} parent=39 // pred_check_branch
          %266 = sbr.rel (%p264) target = $region44
        $region43: #{seqskip_apply.1} parent=39 // pred_region
          %267 = dma.done %s260, 128
        $region44: #{seqskip_apply.1} parent=39 // pred_fallthru
          _
        // Predicated region
        $region45: #{seqskip_apply.1} parent=39 // pred_check
          %p268 = pneg %p78
        $region46: #{seqskip_apply.1} parent=39 // pred_check_branch
          %270 = sbr.rel (%p268) target = $region48
        $region47: #{seqskip_apply.1} parent=39 // pred_region
          %271 = dma.done [#allocation7], 1024
        $region48: #{seqskip_apply.1} parent=39 // pred_fallthru
          _
        // Predicated region
        $region49: #{seqskip_apply.1} parent=39 // pred_check
          %p272 = pneg %p99
        $region50: #{seqskip_apply.1} parent=39 // pred_check_branch
          %274 = sbr.rel (%p272) target = $region52
        $region51: #{seqskip_apply.1} parent=39 // pred_region
          %275 = dma.done [#allocation7], 16
        $region52: #{seqskip_apply.1} parent=39 // pred_fallthru
          _
        // Predicated region
        $region53: #{seqskip_apply.1} parent=39 // pred_check
          %p276 = pneg %p120
        $region54: #{seqskip_apply.1} parent=39 // pred_check_branch
          %278 = sbr.rel (%p276) target = $region56
        $region55: #{seqskip_apply.1} parent=39 // pred_region
          %279 = dma.done [#allocation10], 1024
        $region56: #{seqskip_apply.1} parent=39 // pred_fallthru
          _
        // Predicated region
        $region57: #{seqskip_apply.1} parent=39 // pred_check
          %p280 = pneg %p141
        $region58: #{seqskip_apply.1} parent=39 // pred_check_branch
          %282 = sbr.rel (%p280) target = $region60
        $region59: #{seqskip_apply.1} parent=39 // pred_region
          %283 = dma.done [#allocation10], 16
        $region60: #{seqskip_apply.1} parent=39 // pred_fallthru
          _
        %s284 = sand.u32 %s44, 1
        %s285 = scalar_lea.sflag [#allocation4], %s284
        %s286 = sand.u32 %s44, 1
        %s287 = smul.addr %s286, 8
        %s288 = scalar_lea.vmem [#allocation3], %s287
        %p289 = pneg %p57
        %p290 = pneg %p54
        %p291 = pneg %p78
        %p292 = pneg %p75
        %p293 = pneg %p99
        %p294 = pneg %p96
        %p295 = pneg %p120
        %p296 = pneg %p117
        %p297 = pneg %p141
        %p298 = pneg %p138
        %p299 = pneg %p167
        %p300 = pneg %p164
        %s301 = sand.u32 %s154, 1
        %s302 = scalar_lea.sflag [#allocation5], %s301
        %s303 = sand.u32 %s154, 1
        %s304 = smul.addr %s303, 8
        %s305 = scalar_lea.vmem [#allocation12], %s304
        %p307 = scmp.eq.s32.totalorder %s29, 0
        // Predicated region
        $region61: #{seqskip_apply.1} parent=39 // pred_check
          %p308 = pneg %p307
        $region62: #{seqskip_apply.1} parent=39 // pred_check_branch
          %310 = sbr.rel (%p308) target = $region64
        $region63: #{seqskip_apply.1} parent=39 // pred_region
          %311 = vst [vmem:[#allocation2] sm:$0xff] 0.0
        $region64: #{seqskip_apply.1} parent=39 // pred_fallthru
          _
        %v312 = vld [vmem:[%s263] sm:$0xff]
        %v313 = vpack.c.bf16 %v312, %v312
        %v314 = vld [vmem:[#allocation6] sm:$0xf]
        %v315 = vld [vmem:[#allocation6 + $0x4] sm:$0xf]
        %v316 = vld [vmem:[#allocation6 + $0x8] sm:$0xf]
        %v317 = vld [vmem:[#allocation6 + $0xc] sm:$0xf]
        %v318 = vld [vmem:[#allocation6 + $0x10] sm:$0xf]
        %v319 = vld [vmem:[#allocation6 + $0x14] sm:$0xf]
        %v320 = vld [vmem:[#allocation6 + $0x18] sm:$0xf]
        %v321 = vld [vmem:[#allocation6 + $0x1c] sm:$0xf]
        %v322 = vld [vmem:[#allocation6 + $0x20] sm:$0xf]
        %v323 = vld [vmem:[#allocation6 + $0x24] sm:$0xf]
        %v324 = vld [vmem:[#allocation6 + $0x28] sm:$0xf]
        %v325 = vld [vmem:[#allocation6 + $0x2c] sm:$0xf]
        %v326 = vld [vmem:[#allocation6 + $0x30] sm:$0xf]
        %v327 = vld [vmem:[#allocation6 + $0x34] sm:$0xf]
        %v328 = vld [vmem:[#allocation6 + $0x38] sm:$0xf]
        %v329 = vld [vmem:[#allocation6 + $0x3c] sm:$0xf]
        %v330 = vld [vmem:[#allocation8] sm:$0x1]
        %v332 = vlaneseq
        %v333 = vshrl.u32 %v332, 7
        %v334 = vsub.s32 0, %v333
        %v335 = vrot.slane %v330, %v334
        %v353 = vunpack.c.l.b16 %v314
        %v354 = vunpack.c.l.b16 %v315
        %v355 = vunpack.c.l.b16 %v316
        %v356 = vunpack.c.l.b16 %v317
        %v357 = vunpack.c.l.b16 %v318
        %v358 = vunpack.c.l.b16 %v319
        %v359 = vunpack.c.l.b16 %v320
        %v360 = vunpack.c.l.b16 %v321
        %v361 = vunpack.c.l.b16 %v322
        %v362 = vunpack.c.l.b16 %v323
        %v363 = vunpack.c.l.b16 %v324
        %v364 = vunpack.c.l.b16 %v325
        %v365 = vunpack.c.l.b16 %v326
        %v366 = vunpack.c.l.b16 %v327
        %v367 = vunpack.c.l.b16 %v328
        %v368 = vunpack.c.l.b16 %v329
        %v369 = vpack.c.b16 %v354, %v353
        %v370 = vpack.c.b16 %v356, %v355
        %v371 = vpack.c.b16 %v358, %v357
        %v372 = vpack.c.b16 %v360, %v359
        %v373 = vpack.c.b16 %v362, %v361
        %v374 = vpack.c.b16 %v364, %v363
        %v375 = vpack.c.b16 %v366, %v365
        %v376 = vpack.c.b16 %v368, %v367
        %385 = vmatprep.subr.bf16.mxu0 0
        %386 = vmatpush1.bf16.msra.mxu0 %v369
        %387 = vmatprep.subr.bf16.mxu0 0
        %388 = vmatpush1.bf16.msra.mxu0 %v370
        %389 = vmatprep.subr.bf16.mxu0 0
        %390 = vmatpush1.bf16.msra.mxu0 %v371
        %391 = vmatprep.subr.bf16.mxu0 0
        %392 = vmatpush1.bf16.msra.mxu0 %v372
        %393 = vmatprep.subr.bf16.mxu0 0
        %394 = vmatpush1.bf16.msra.mxu0 %v373
        %395 = vmatprep.subr.bf16.mxu0 0
        %396 = vmatpush1.bf16.msra.mxu0 %v374
        %397 = vmatprep.subr.bf16.mxu0 0
        %398 = vmatpush1.bf16.msra.mxu0 %v375
        %399 = vmatprep.subr.bf16.mxu0 0
        %400 = vmatpush1.bf16.msra.mxu0 %v376
        %401 = vmatprep.subr.bf16.mxu0 0
        %402 = vmatpush1.bf16.msra.mxu0 0
        %403 = vmatprep.subr.bf16.mxu0 0
        %404 = vmatpush1.bf16.msra.mxu0 0
        %405 = vmatprep.subr.bf16.mxu0 0
        %406 = vmatpush1.bf16.msra.mxu0 0
        %407 = vmatprep.subr.bf16.mxu0 0
        %408 = vmatpush1.bf16.msra.mxu0 0
        %409 = vmatprep.subr.bf16.mxu0 0
        %410 = vmatpush1.bf16.msra.mxu0 0
        %411 = vmatprep.subr.bf16.mxu0 0
        %412 = vmatpush1.bf16.msra.mxu0 0
        %413 = vmatprep.subr.bf16.mxu0 0
        %414 = vmatpush1.bf16.msra.mxu0 0
        %415 = vmatprep.subr.bf16.mxu0 0
        %416 = vmatpush1.bf16.msra.mxu0 0
        %417 = vmatprep.mubr.bf16.mxu0 0
        %418 = vmatmul.mubr.bf16.gmra.mrb[0].mxu0 %v313
        %v419 = vpop.f32.mrb[0].mxu0
        %v420 = vadd.f32 %v335, %v419
        %v421 = vpop.f32.mrb[0].mxu0
        %v422 = vpop.f32.mrb[0].mxu0
        %v423 = vpop.f32.mrb[0].mxu0
        %424 = vdwg.mxu0
        %v425 = vpack.c.bf16 %v420, %v420
        %v426 = vld [vmem:[#allocation2] sm:$0xff]
        %v427 = vld [vmem:[#allocation9] sm:$0xf]
        %v428 = vld [vmem:[#allocation9 + $0x4] sm:$0xf]
        %v429 = vld [vmem:[#allocation9 + $0x8] sm:$0xf]
        %v430 = vld [vmem:[#allocation9 + $0xc] sm:$0xf]
        %v431 = vld [vmem:[#allocation9 + $0x10] sm:$0xf]
        %v432 = vld [vmem:[#allocation9 + $0x14] sm:$0xf]
        %v433 = vld [vmem:[#allocation9 + $0x18] sm:$0xf]
        %v434 = vld [vmem:[#allocation9 + $0x1c] sm:$0xf]
        %v435 = vld [vmem:[#allocation9 + $0x20] sm:$0xf]
        %v436 = vld [vmem:[#allocation9 + $0x24] sm:$0xf]
        %v437 = vld [vmem:[#allocation9 + $0x28] sm:$0xf]
        %v438 = vld [vmem:[#allocation9 + $0x2c] sm:$0xf]
        %v439 = vld [vmem:[#allocation9 + $0x30] sm:$0xf]
        %v440 = vld [vmem:[#allocation9 + $0x34] sm:$0xf]
        %v441 = vld [vmem:[#allocation9 + $0x38] sm:$0xf]
        %v442 = vld [vmem:[#allocation9 + $0x3c] sm:$0xf]
        %v459 = vunpack.c.l.b16 %v427
        %v460 = vunpack.c.l.b16 %v428
        %v461 = vunpack.c.l.b16 %v429
        %v462 = vunpack.c.l.b16 %v430
        %v463 = vunpack.c.l.b16 %v431
        %v464 = vunpack.c.l.b16 %v432
        %v465 = vunpack.c.l.b16 %v433
        %v466 = vunpack.c.l.b16 %v434
        %v467 = vunpack.c.l.b16 %v435
        %v468 = vunpack.c.l.b16 %v436
        %v469 = vunpack.c.l.b16 %v437
        %v470 = vunpack.c.l.b16 %v438
        %v471 = vunpack.c.l.b16 %v439
        %v472 = vunpack.c.l.b16 %v440
        %v473 = vunpack.c.l.b16 %v441
        %v474 = vunpack.c.l.b16 %v442
        %v475 = vpack.c.b16 %v460, %v459
        %v476 = vpack.c.b16 %v462, %v461
        %v477 = vpack.c.b16 %v464, %v463
        %v478 = vpack.c.b16 %v466, %v465
        %v479 = vpack.c.b16 %v468, %v467
        %v480 = vpack.c.b16 %v470, %v469
        %v481 = vpack.c.b16 %v472, %v471
        %v482 = vpack.c.b16 %v474, %v473
        %491 = vmatprep.subr.bf16.mxu0 0
        %492 = vmatpush1.bf16.msra.mxu0 %v475
        %493 = vmatprep.subr.bf16.mxu0 0
        %494 = vmatpush1.bf16.msra.mxu0 %v476
        %495 = vmatprep.subr.bf16.mxu0 0
        %496 = vmatpush1.bf16.msra.mxu0 %v477
        %497 = vmatprep.subr.bf16.mxu0 0
        %498 = vmatpush1.bf16.msra.mxu0 %v478
        %499 = vmatprep.subr.bf16.mxu0 0
        %500 = vmatpush1.bf16.msra.mxu0 %v479
        %501 = vmatprep.subr.bf16.mxu0 0
        %502 = vmatpush1.bf16.msra.mxu0 %v480
        %503 = vmatprep.subr.bf16.mxu0 0
        %504 = vmatpush1.bf16.msra.mxu0 %v481
        %505 = vmatprep.subr.bf16.mxu0 0
        %506 = vmatpush1.bf16.msra.mxu0 %v482
        %507 = vmatprep.subr.bf16.mxu0 0
        %508 = vmatpush1.bf16.msra.mxu0 0
        %509 = vmatprep.subr.bf16.mxu0 0
        %510 = vmatpush1.bf16.msra.mxu0 0
        %511 = vmatprep.subr.bf16.mxu0 0
        %512 = vmatpush1.bf16.msra.mxu0 0
        %513 = vmatprep.subr.bf16.mxu0 0
        %514 = vmatpush1.bf16.msra.mxu0 0
        %515 = vmatprep.subr.bf16.mxu0 0
        %516 = vmatpush1.bf16.msra.mxu0 0
        %517 = vmatprep.subr.bf16.mxu0 0
        %518 = vmatpush1.bf16.msra.mxu0 0
        %519 = vmatprep.subr.bf16.mxu0 0
        %520 = vmatpush1.bf16.msra.mxu0 0
        %521 = vmatprep.subr.bf16.mxu0 0
        %522 = vmatpush1.bf16.msra.mxu0 0
        %523 = vmatprep.mubr.bf16.mxu0 0
        %524 = vmatmul.mubr.bf16.gmra.mrb[0].mxu0 %v425
        %v525 = vpop.f32.mrb[0].mxu0
        %v526 = vadd.f32 0.0, %v525
        %v527 = vpop.f32.mrb[0].mxu0
        %v528 = vpop.f32.mrb[0].mxu0
        %v529 = vpop.f32.mrb[0].mxu0
        %530 = vdwg.mxu0
        %v531 = vadd.f32 %v426, %v526
        %532 = vst [vmem:[#allocation2] sm:$0xff] %v531
        // Predicated region
        $region65: #{seqskip_apply.1} parent=39 // pred_check
          %p533 = pneg %p307
        $region66: #{seqskip_apply.1} parent=39 // pred_check_branch
          %535 = sbr.rel (%p533) target = $region68
        $region67: #{seqskip_apply.1} parent=39 // pred_region
          %v536 = vld [vmem:[#allocation2] sm:$0xff]
          %v537 = vld [vmem:[#allocation11] sm:$0x1]
          %v539 = vlaneseq
          %v540 = vshrl.u32 %v539, 7
          %v541 = vsub.s32 0, %v540
          %v542 = vrot.slane %v537, %v541
          %v544 = vadd.f32 %v536, %v542
          %v545 = vadd.f32 %v544, %v312
          %546 = vst [vmem:[%s305] sm:$0xff] %v545
        $region68: #{seqskip_apply.1} parent=39 // pred_fallthru
          _
        %s547 = sand.u32 %s154, 1
        %s548 = scalar_lea.sflag [#allocation5], %s547
        %s549 = sand.u32 %s154, 1
        %s550 = smul.addr %s549, 8
        %s551 = scalar_lea.vmem [#allocation12], %s550
        // Predicated region
        $region69: #{seqskip_apply.1} parent=39 // pred_check
          %p552 = pneg %p164
        $region70: #{seqskip_apply.1} parent=39 // pred_check_branch
          %554 = sbr.rel (%p552) target = $region72
        $region71: #{seqskip_apply.1} parent=39 // pred_region
          %s556 = ssub.s32 128, 128
          %557 = vsyncadd %s548, %s556
          %s558 = smul.addr %s28, 128
          %s559 = scalar_lea.hbm %s5, %s558
          %s561 = sshll.u32 %s551, 4
          %s562 = int_to_ptr.vmem [resolvable:$true] %s561
          %564 = dma.vmem_to_hbm [thread:$0]  %s562, 128, %s559, %s548
        $region72: #{seqskip_apply.1} parent=39 // pred_fallthru
          _
      $region40: #{seqskip_apply.1} parent=5 // pred_fallthru
        _
      %p565 = scmp.le.s32.totalorder 2, %s19
      // Predicated region
      $region73: #{seqskip_apply.1} parent=5 // pred_check
        %p566 = pneg %p565
      $region74: #{seqskip_apply.1} parent=5 // pred_check_branch
        %568 = sbr.rel (%p566) target = $region76
      $region75: #{seqskip_apply.1} parent=5 // pred_region
        %s569 = ssub.s32 %s19, 2
        // Predicated region
        $region77: #{seqskip_apply.1} parent=75 // pred_check
          %p570 = pneg %p170
        $region78: #{seqskip_apply.1} parent=75 // pred_check_branch
          %572 = sbr.rel (%p570) target = $region80
        $region79: #{seqskip_apply.1} parent=75 // pred_region
          %s573 = sand.u32 %s155, 1
          %s574 = scalar_lea.sflag [#allocation5], %s573
          %s575 = sand.u32 %s155, 1
          %s576 = smul.addr %s575, 8
          %s577 = scalar_lea.vmem [#allocation12], %s576
          %578 = dma.done %s574, 128
        $region80: #{seqskip_apply.1} parent=75 // pred_fallthru
          _
      $region76: #{seqskip_apply.1} parent=5 // pred_fallthru
        _
    $region6: #{seqskip_apply.1} parent=1 // loop_footer
      %s23 = sadd.s32 1, %s19
    $region7: #{seqskip_apply.1} parent=1 // loop_footer_branch
      %18 = sbr.rel target = $region3
    $region8: #{seqskip_apply.1} parent=1 // loop_exit
      _
    %579 = vsyncpa [#allocation4], 1
    %s580 = scalar_lea.sflag [#allocation4], 1
    %581 = vsyncpa %s580, 1
    %582 = vsyncpa [#allocation7], 1
    %583 = vsyncpa [#allocation10], 1
    %584 = vsyncpa [#allocation5], 1
    %s585 = scalar_lea.sflag [#allocation5], 1
    %586 = vsyncpa %s585, 1

// kernel: seqskip_apply.1
$region0: #{seqskip_apply.1}
  #allocation0 [shape = 'u32[]', space=smem, size = 0x4, offset = 0x4, fixed_abs, tag = 'smem constant byte address 0x4 - core index']
  #allocation1 [shape = 'u32[144,128]{1,0:T(1,128)}', space=vmem, size = 0x12000, scoped, tag = 'internal scratch']
  #allocation2 [shape = 'f32[8,128]{1,0:T(8,128)}', space=vmem, size = 0x1000, scoped, tag = 'scratch operand']
  %s0 = inlined_call_operand.hbm [shape: f32[16,128], index: 0, kind: input, shape index: {}]
  %s1 = inlined_call_operand.hbm [shape: bf16[128,128], index: 1, kind: input, shape index: {}]
  %s2 = inlined_call_operand.hbm [shape: f32[1,128], index: 2, kind: input, shape index: {}]
  %s3 = inlined_call_operand.hbm [shape: bf16[128,128], index: 3, kind: input, shape index: {}]
  %s4 = inlined_call_operand.hbm [shape: f32[1,128], index: 4, kind: input, shape index: {}]
  %s5 = inlined_call_operand.hbm [shape: f32[16,128], index: 5, kind: output, shape index: {}]
  %s6 = sld [smem:[#allocation0]]
  $region81: #{seqskip_apply.1} parent=0
    _
  %s8 = ssub.s32 1, %s6
  %s9 = scalar_select 0, %s8, %s6
  $region1: #{seqskip_apply.1} parent=0
    #allocation3 [shape = 'u8[8192]{0}', space=vmem, size = 0x2000, scoped, tag = 'input window, operand 0']
    #allocation4 [shape = 's32[2]{0}', space=sflag, size = 0x8, scoped, tag = 'scoped memory for seqskip_apply.1']
    #allocation5 [shape = 's32[2]{0}', space=sflag, size = 0x8, scoped, tag = 'scoped memory for seqskip_apply.1']
    #allocation6 [shape = 'u8[32768]{0}', space=vmem, size = 0x8000, scoped, tag = 'input window, operand 1, single buffered']
    #allocation7 [shape = 's32[1]{0}', space=sflag, size = 0x4, scoped, tag = 'scoped memory for seqskip_apply.1']
    #allocation8 [shape = 'u8[512]{0}', space=vmem, size = 0x400, scoped, tag = 'input window, operand 2, single buffered']
    #allocation9 [shape = 'u8[32768]{0}', space=vmem, size = 0x8000, scoped, tag = 'input window, operand 3, single buffered']
    #allocation10 [shape = 's32[1]{0}', space=sflag, size = 0x4, scoped, tag = 'scoped memory for seqskip_apply.1']
    #allocation11 [shape = 'u8[512]{0}', space=vmem, size = 0x400, scoped, tag = 'input window, operand 4, single buffered']
    #allocation12 [shape = 'u8[8192]{0}', space=vmem, size = 0x2000, scoped, tag = 'output window, operand 0']
    %10 = vsyncpa [#allocation4], 0
    %s11 = scalar_lea.sflag [#allocation4], 1
    %12 = vsyncpa %s11, 0
    %13 = vsyncpa [#allocation7], 0
    %14 = vsyncpa [#allocation10], 0
    %15 = vsyncpa [#allocation5], 0
    %s16 = scalar_lea.sflag [#allocation5], 1
    %17 = vsyncpa %s16, 0
    loop: start=0, step=1, limit=4
    $region2: #{seqskip_apply.1} parent=1 // loop_pre_header
      _
    $region3: #{seqskip_apply.1} parent=1 // loop_header
      %s19 = sphi 0, %s23
      %p20 = scmp.ge.s32.totalorder %s19, 4
      %s26 = sphi 0, %s38
      %s27 = sphi 0, %s34
      %s28 = sphi 0, %s26
      %s29 = sphi 0, %s27
      %s30 = sphi 0, %s28
      %s31 = sphi 0, %s29
      %s41 = sphi 0, %s43
      %s44 = sphi 0, %s41
      %s45 = sphi 0, %s44
      %s61 = sphi 0, %s45
      %s65 = sphi 0, %s65
      %s67 = sphi 0, %s65
      %s68 = sphi 0, %s67
      %s82 = sphi 0, %s68
      %s86 = sphi 0, %s86
      %s88 = sphi 0, %s86
      %s89 = sphi 0, %s88
      %s103 = sphi 0, %s89
      %s107 = sphi 0, %s107
      %s109 = sphi 0, %s107
      %s110 = sphi 0, %s109
      %s124 = sphi 0, %s110
      %s128 = sphi 0, %s128
      %s130 = sphi 0, %s128
      %s131 = sphi 0, %s130
      %s145 = sphi 0, %s131
      %s151 = sphi 0, %s153
      %s154 = sphi 0, %s151
      %s155 = sphi 0, %s154
      %s171 = sphi 0, %s155
    $region4: #{seqskip_apply.1} parent=1 // loop_header_branch
      %22 = sbr.rel (%p20) target = $region8
    $region5: #{seqskip_apply.1} parent=1 // loop_body
      %s24 = ssub.s32 %s19, 1
      %s25 = ssub.s32 %s19, 2
      %s32 = sadd.s32 1, %s27
      %p33 = scmp.ge.s32.totalorder %s32, 1
      %s34 = scalar_select %p33, 0, %s32
      %s35 = sadd.s32 1, %s26
      %s36 = scalar_select %p33, %s35, %s26
      %p37 = scmp.ge.s32.totalorder %s36, 2
      %s38 = scalar_select %p37, 0, %s36
      %s39 = ssub.s32 %s26, %s38
      %p40 = scmp.eq.s32.totalorder %s39, 0
      %s42 = sadd.s32 %s41, 1
      %s43 = scalar_select %p40, %s41, %s42
      %p46 = pneg %p40
      %p47 = scmp.eq.s32.totalorder %s19, 1
      %p48 = por %p46, %p47
      %p49 = scmp.ne.s32.totalorder %s41, %s44
      %p50 = scmp.eq.s32.totalorder %s19, 0
      %p51 = por %p49, %p50
      %p52 = scmp.ne.s32.totalorder %s41, %s44
      %p53 = scmp.eq.s32.totalorder %s24, 1
      %p54 = por %p52, %p53
      %p55 = scmp.ne.s32.totalorder %s44, %s45
      %p56 = scmp.eq.s32.totalorder %s24, 0
      %p57 = por %p55, %p56
      %p58 = scmp.ne.s32.totalorder %s44, %s45
      %p59 = scmp.eq.s32.totalorder %s25, 1
      %p60 = por %p58, %p59
      %p62 = scmp.ne.s32.totalorder %s45, %s61
      %p63 = scmp.eq.s32.totalorder %s25, 0
      %p64 = por %p62, %p63
      %s66 = sadd.s32 %s65, 1
      %p69 = scmp.eq.s32.totalorder %s19, 1
      %p70 = scmp.ne.s32.totalorder %s65, %s67
      %p71 = scmp.eq.s32.totalorder %s19, 0
      %p72 = por %p70, %p71
      %p73 = scmp.ne.s32.totalorder %s65, %s67
      %p74 = scmp.eq.s32.totalorder %s24, 1
      %p75 = por %p73, %p74
      %p76 = scmp.ne.s32.totalorder %s67, %s68
      %p77 = scmp.eq.s32.totalorder %s24, 0
      %p78 = por %p76, %p77
      %p79 = scmp.ne.s32.totalorder %s67, %s68
      %p80 = scmp.eq.s32.totalorder %s25, 1
      %p81 = por %p79, %p80
      %p83 = scmp.ne.s32.totalorder %s68, %s82
      %p84 = scmp.eq.s32.totalorder %s25, 0
      %p85 = por %p83, %p84
      %s87 = sadd.s32 %s86, 1
      %p90 = scmp.eq.s32.totalorder %s19, 1
      %p91 = scmp.ne.s32.totalorder %s86, %s88
      %p92 = scmp.eq.s32.totalorder %s19, 0
      %p93 = por %p91, %p92
      %p94 = scmp.ne.s32.totalorder %s86, %s88
      %p95 = scmp.eq.s32.totalorder %s24, 1
      %p96 = por %p94, %p95
      %p97 = scmp.ne.s32.totalorder %s88, %s89
      %p98 = scmp.eq.s32.totalorder %s24, 0
      %p99 = por %p97, %p98
      %p100 = scmp.ne.s32.totalorder %s88, %s89
      %p101 = scmp.eq.s32.totalorder %s25, 1
      %p102 = por %p100, %p101
      %p104 = scmp.ne.s32.totalorder %s89, %s103
      %p105 = scmp.eq.s32.totalorder %s25, 0
      %p106 = por %p104, %p105
      %s108 = sadd.s32 %s107, 1
      %p111 = scmp.eq.s32.totalorder %s19, 1
      %p112 = scmp.ne.s32.totalorder %s107, %s109
      %p113 = scmp.eq.s32.totalorder %s19, 0
      %p114 = por %p112, %p113
      %p115 = scmp.ne.s32.totalorder %s107, %s109
      %p116 = scmp.eq.s32.totalorder %s24, 1
      %p117 = por %p115, %p116
      %p118 = scmp.ne.s32.totalorder %s109, %s110
      %p119 = scmp.eq.s32.totalorder %s24, 0
      %p120 = por %p118, %p119
      %p121 = scmp.ne.s32.totalorder %s109, %s110
      %p122 = scmp.eq.s32.totalorder %s25, 1
      %p123 = por %p121, %p122
      %p125 = scmp.ne.s32.totalorder %s110, %s124
      %p126 = scmp.eq.s32.totalorder %s25, 0
      %p127 = por %p125, %p126
      %s129 = sadd.s32 %s128, 1
      %p132 = scmp.eq.s32.totalorder %s19, 1
      %p133 = scmp.ne.s32.totalorder %s128, %s130
      %p134 = scmp.eq.s32.totalorder %s19, 0
      %p135 = por %p133, %p134
      %p136 = scmp.ne.s32.totalorder %s128, %s130
      %p137 = scmp.eq.s32.totalorder %s24, 1
      %p138 = por %p136, %p137
      %p139 = scmp.ne.s32.totalorder %s130, %s131
      %p140 = scmp.eq.s32.totalorder %s24, 0
      %p141 = por %p139, %p140
      %p142 = scmp.ne.s32.totalorder %s130, %s131
      %p143 = scmp.eq.s32.totalorder %s25, 1
      %p144 = por %p142, %p143
      %p146 = scmp.ne.s32.totalorder %s131, %s145
      %p147 = scmp.eq.s32.totalorder %s25, 0
      %p148 = por %p146, %p147
      %s149 = ssub.s32 %s26, %s38
      %p150 = scmp.eq.s32.totalorder %s149, 0
      %s152 = sadd.s32 %s151, 1
      %s153 = scalar_select %p150, %s151, %s152
      %p156 = pneg %p150
      %p157 = scmp.eq.s32.totalorder %s19, 1
      %p158 = por %p156, %p157
      %p159 = scmp.ne.s32.totalorder %s151, %s154
      %p160 = scmp.eq.s32.totalorder %s19, 0
      %p161 = por %p159, %p160
      %p162 = scmp.ne.s32.totalorder %s151, %s154
      %p163 = scmp.eq.s32.totalorder %s24, 1
      %p164 = por %p162, %p163
      %p165 = scmp.ne.s32.totalorder %s154, %s155
      %p166 = scmp.eq.s32.totalorder %s24, 0
      %p167 = por %p165, %p166
      %p168 = scmp.ne.s32.totalorder %s154, %s155
      %p169 = scmp.eq.s32.totalorder %s25, 1
      %p170 = por %p168, %p169
      %p172 = scmp.ne.s32.totalorder %s155, %s171
      %p173 = scmp.eq.s32.totalorder %s25, 0
      %p174 = por %p172, %p173
      %p175 = scmp.le.s32.totalorder 1, %s19
      %p176 = scmp.lt.s32.totalorder %s19, 3
      %p177 = pnand %p175, %p176
      %p178 = pneg %p177
      // Predicated region
      $region9: #{seqskip_apply.1} parent=5 // pred_check
        _
      $region10: #{seqskip_apply.1} parent=5 // pred_check_branch
        %180 = sbr.rel (%p177) target = $region12
      $region11: #{seqskip_apply.1} parent=5 // pred_region
        %s181 = ssub.s32 %s19, 1
        // Predicated region
        $region13: #{seqskip_apply.1} parent=11 // pred_check
          %p182 = pneg %p78
        $region14: #{seqskip_apply.1} parent=11 // pred_check_branch
          %184 = sbr.rel (%p182) target = $region16
        $region15: #{seqskip_apply.1} parent=11 // pred_region
          %s186 = ssub.s32 1024, 1024
          %187 = vsyncadd [#allocation7], %s186
          %s188 = sshll.u32 [#allocation6], 4
          %s189 = int_to_ptr.vmem [resolvable:$true] %s188
          %194 = dma.hbm_to_vmem [thread:$0]  %s1, 1024, %s189, [#allocation7], 64, 64, 4
        $region16: #{seqskip_apply.1} parent=11 // pred_fallthru
          _
        // Predicated region
        $region17: #{seqskip_apply.1} parent=11 // pred_check
          %p195 = pneg %p99
        $region18: #{seqskip_apply.1} parent=11 // pred_check_branch
          %197 = sbr.rel (%p195) target = $region20
        $region19: #{seqskip_apply.1} parent=11 // pred_region
          %s199 = ssub.s32 16, 16
          %200 = vsyncadd [#allocation7], %s199
          %s202 = sshll.u32 [#allocation8], 4
          %s203 = int_to_ptr.vmem [resolvable:$true] %s202
          %205 = dma.hbm_to_vmem [thread:$0]  %s2, 16, %s203, [#allocation7]
        $region20: #{seqskip_apply.1} parent=11 // pred_fallthru
          _
        // Predicated region
        $region21: #{seqskip_apply.1} parent=11 // pred_check
          %p206 = pneg %p120
        $region22: #{seqskip_apply.1} parent=11 // pred_check_branch
          %208 = sbr.rel (%p206) target = $region24
        $region23: #{seqskip_apply.1} parent=11 // pred_region
          %s210 = ssub.s32 1024, 1024
          %211 = vsyncadd [#allocation10], %s210
          %s212 = sshll.u32 [#allocation9], 4
          %s213 = int_to_ptr.vmem [resolvable:$true] %s212
          %218 = dma.hbm_to_vmem [thread:$0]  %s3, 1024, %s213, [#allocation10], 64, 64, 4
        $region24: #{seqskip_apply.1} parent=11 // pred_fallthru
          _
        // Predicated region
        $region25: #{seqskip_apply.1} parent=11 // pred_check
          %p219 = pneg %p141
        $region26: #{seqskip_apply.1} parent=11 // pred_check_branch
          %221 = sbr.rel (%p219) target = $region28
        $region27: #{seqskip_apply.1} parent=11 // pred_region
          %s223 = ssub.s32 16, 16
          %224 = vsyncadd [#allocation10], %s223
          %s226 = sshll.u32 [#allocation11], 4
          %s227 = int_to_ptr.vmem [resolvable:$true] %s226
          %229 = dma.hbm_to_vmem [thread:$0]  %s4, 16, %s227, [#allocation10]
        $region28: #{seqskip_apply.1} parent=11 // pred_fallthru
          _
      $region12: #{seqskip_apply.1} parent=5 // pred_fallthru
        _
      %p230 = scmp.lt.s32.totalorder %s19, 2
      // Predicated region
      $region29: #{seqskip_apply.1} parent=5 // pred_check
        %p231 = pneg %p230
      $region30: #{seqskip_apply.1} parent=5 // pred_check_branch
        %233 = sbr.rel (%p231) target = $region32
      $region31: #{seqskip_apply.1} parent=5 // pred_region
        // Predicated region
        $region33: #{seqskip_apply.1} parent=31 // pred_check
          %p234 = pneg %p51
        $region34: #{seqskip_apply.1} parent=31 // pred_check_branch
          %236 = sbr.rel (%p234) target = $region36
        $region35: #{seqskip_apply.1} parent=31 // pred_region
          %s237 = sand.u32 %s41, 1
          %s238 = scalar_lea.sflag [#allocation4], %s237
          %s239 = sand.u32 %s41, 1
          %s240 = smul.addr %s239, 8
          %s241 = scalar_lea.vmem [#allocation3], %s240
          %s243 = ssub.s32 128, 128
          %244 = vsyncadd %s238, %s243
          %s245 = smul.addr %s26, 128
          %s246 = scalar_lea.hbm %s0, %s245
          %s248 = sshll.u32 %s241, 4
          %s249 = int_to_ptr.vmem [resolvable:$true] %s248
          %251 = dma.hbm_to_vmem [thread:$0]  %s246, 128, %s249, %s238
        $region36: #{seqskip_apply.1} parent=31 // pred_fallthru
          _
      $region32: #{seqskip_apply.1} parent=5 // pred_fallthru
        _
      %p252 = scmp.le.s32.totalorder 1, %s19
      %p253 = scmp.lt.s32.totalorder %s19, 3
      %p254 = pnand %p252, %p253
      %p255 = pneg %p254
      // Predicated region
      $region37: #{seqskip_apply.1} parent=5 // pred_check
        _
      $region38: #{seqskip_apply.1} parent=5 // pred_check_branch
        %257 = sbr.rel (%p254) target = $region40
      $region39: #{seqskip_apply.1} parent=5 // pred_region
        %s258 = ssub.s32 %s19, 1
        %s259 = sand.u32 %s44, 1
        %s260 = scalar_lea.sflag [#allocation4], %s259
        %s261 = sand.u32 %s44, 1
        %s262 = smul.addr %s261, 8
        %s263 = scalar_lea.vmem [#allocation3], %s262
        // Predicated region
        $region41: #{seqskip_apply.1} parent=39 // pred_check
          %p264 = pneg %p57
        $region42: #{seqskip_apply.1} parent=39 // pred_check_branch
          %266 = sbr.rel (%p264) target = $region44
        $region43: #{seqskip_apply.1} parent=39 // pred_region
          %267 = dma.done %s260, 128
        $region44: #{seqskip_apply.1} parent=39 // pred_fallthru
          _
        // Predicated region
        $region45: #{seqskip_apply.1} parent=39 // pred_check
          %p268 = pneg %p78
        $region46: #{seqskip_apply.1} parent=39 // pred_check_branch
          %270 = sbr.rel (%p268) target = $region48
        $region47: #{seqskip_apply.1} parent=39 // pred_region
          %271 = dma.done [#allocation7], 1024
        $region48: #{seqskip_apply.1} parent=39 // pred_fallthru
          _
        // Predicated region
        $region49: #{seqskip_apply.1} parent=39 // pred_check
          %p272 = pneg %p99
        $region50: #{seqskip_apply.1} parent=39 // pred_check_branch
          %274 = sbr.rel (%p272) target = $region52
        $region51: #{seqskip_apply.1} parent=39 // pred_region
          %275 = dma.done [#allocation7], 16
        $region52: #{seqskip_apply.1} parent=39 // pred_fallthru
          _
        // Predicated region
        $region53: #{seqskip_apply.1} parent=39 // pred_check
          %p276 = pneg %p120
        $region54: #{seqskip_apply.1} parent=39 // pred_check_branch
          %278 = sbr.rel (%p276) target = $region56
        $region55: #{seqskip_apply.1} parent=39 // pred_region
          %279 = dma.done [#allocation10], 1024
        $region56: #{seqskip_apply.1} parent=39 // pred_fallthru
          _
        // Predicated region
        $region57: #{seqskip_apply.1} parent=39 // pred_check
          %p280 = pneg %p141
        $region58: #{seqskip_apply.1} parent=39 // pred_check_branch
          %282 = sbr.rel (%p280) target = $region60
        $region59: #{seqskip_apply.1} parent=39 // pred_region
          %283 = dma.done [#allocation10], 16
        $region60: #{seqskip_apply.1} parent=39 // pred_fallthru
          _
        %s284 = sand.u32 %s44, 1
        %s285 = scalar_lea.sflag [#allocation4], %s284
        %s286 = sand.u32 %s44, 1
        %s287 = smul.addr %s286, 8
        %s288 = scalar_lea.vmem [#allocation3], %s287
        %p289 = pneg %p57
        %p290 = pneg %p54
        %p291 = pneg %p78
        %p292 = pneg %p75
        %p293 = pneg %p99
        %p294 = pneg %p96
        %p295 = pneg %p120
        %p296 = pneg %p117
        %p297 = pneg %p141
        %p298 = pneg %p138
        %p299 = pneg %p167
        %p300 = pneg %p164
        %s301 = sand.u32 %s154, 1
        %s302 = scalar_lea.sflag [#allocation5], %s301
        %s303 = sand.u32 %s154, 1
        %s304 = smul.addr %s303, 8
        %s305 = scalar_lea.vmem [#allocation12], %s304
        %p307 = scmp.eq.s32.totalorder %s29, 0
        // Predicated region
        $region61: #{seqskip_apply.1} parent=39 // pred_check
          %p308 = pneg %p307
        $region62: #{seqskip_apply.1} parent=39 // pred_check_branch
          %310 = sbr.rel (%p308) target = $region64
        $region63: #{seqskip_apply.1} parent=39 // pred_region
          %311 = vst [vmem:[#allocation2] sm:$0xff] 0.0
        $region64: #{seqskip_apply.1} parent=39 // pred_fallthru
          _
        %v312 = vld [vmem:[%s263] sm:$0xff]
        %v313 = vpack.c.bf16 %v312, %v312
        %v314 = vld [vmem:[#allocation6] sm:$0xf]
        %v315 = vld [vmem:[#allocation6 + $0x4] sm:$0xf]
        %v316 = vld [vmem:[#allocation6 + $0x8] sm:$0xf]
        %v317 = vld [vmem:[#allocation6 + $0xc] sm:$0xf]
        %v318 = vld [vmem:[#allocation6 + $0x10] sm:$0xf]
        %v319 = vld [vmem:[#allocation6 + $0x14] sm:$0xf]
        %v320 = vld [vmem:[#allocation6 + $0x18] sm:$0xf]
        %v321 = vld [vmem:[#allocation6 + $0x1c] sm:$0xf]
        %v322 = vld [vmem:[#allocation6 + $0x20] sm:$0xf]
        %v323 = vld [vmem:[#allocation6 + $0x24] sm:$0xf]
        %v324 = vld [vmem:[#allocation6 + $0x28] sm:$0xf]
        %v325 = vld [vmem:[#allocation6 + $0x2c] sm:$0xf]
        %v326 = vld [vmem:[#allocation6 + $0x30] sm:$0xf]
        %v327 = vld [vmem:[#allocation6 + $0x34] sm:$0xf]
        %v328 = vld [vmem:[#allocation6 + $0x38] sm:$0xf]
        %v329 = vld [vmem:[#allocation6 + $0x3c] sm:$0xf]
        %v330 = vld [vmem:[#allocation8] sm:$0x1]
        %v332 = vlaneseq
        %v333 = vshrl.u32 %v332, 7
        %v334 = vsub.s32 0, %v333
        %v335 = vrot.slane %v330, %v334
        %v353 = vunpack.c.l.b16 %v314
        %v354 = vunpack.c.l.b16 %v315
        %v355 = vunpack.c.l.b16 %v316
        %v356 = vunpack.c.l.b16 %v317
        %v357 = vunpack.c.l.b16 %v318
        %v358 = vunpack.c.l.b16 %v319
        %v359 = vunpack.c.l.b16 %v320
        %v360 = vunpack.c.l.b16 %v321
        %v361 = vunpack.c.l.b16 %v322
        %v362 = vunpack.c.l.b16 %v323
        %v363 = vunpack.c.l.b16 %v324
        %v364 = vunpack.c.l.b16 %v325
        %v365 = vunpack.c.l.b16 %v326
        %v366 = vunpack.c.l.b16 %v327
        %v367 = vunpack.c.l.b16 %v328
        %v368 = vunpack.c.l.b16 %v329
        %v369 = vpack.c.b16 %v354, %v353
        %v370 = vpack.c.b16 %v356, %v355
        %v371 = vpack.c.b16 %v358, %v357
        %v372 = vpack.c.b16 %v360, %v359
        %v373 = vpack.c.b16 %v362, %v361
        %v374 = vpack.c.b16 %v364, %v363
        %v375 = vpack.c.b16 %v366, %v365
        %v376 = vpack.c.b16 %v368, %v367
        %385 = vmatprep.subr.bf16.mxu0 0
        %386 = vmatpush1.bf16.msra.mxu0 %v369
        %387 = vmatprep.subr.bf16.mxu0 0
        %388 = vmatpush1.bf16.msra.mxu0 %v370
        %389 = vmatprep.subr.bf16.mxu0 0
        %390 = vmatpush1.bf16.msra.mxu0 %v371
        %391 = vmatprep.subr.bf16.mxu0 0
        %392 = vmatpush1.bf16.msra.mxu0 %v372
        %393 = vmatprep.subr.bf16.mxu0 0
        %394 = vmatpush1.bf16.msra.mxu0 %v373
        %395 = vmatprep.subr.bf16.mxu0 0
        %396 = vmatpush1.bf16.msra.mxu0 %v374
        %397 = vmatprep.subr.bf16.mxu0 0
        %398 = vmatpush1.bf16.msra.mxu0 %v375
        %399 = vmatprep.subr.bf16.mxu0 0
        %400 = vmatpush1.bf16.msra.mxu0 %v376
        %401 = vmatprep.subr.bf16.mxu0 0
        %402 = vmatpush1.bf16.msra.mxu0 0
        %403 = vmatprep.subr.bf16.mxu0 0
        %404 = vmatpush1.bf16.msra.mxu0 0
        %405 = vmatprep.subr.bf16.mxu0 0
        %406 = vmatpush1.bf16.msra.mxu0 0
        %407 = vmatprep.subr.bf16.mxu0 0
        %408 = vmatpush1.bf16.msra.mxu0 0
        %409 = vmatprep.subr.bf16.mxu0 0
        %410 = vmatpush1.bf16.msra.mxu0 0
        %411 = vmatprep.subr.bf16.mxu0 0
        %412 = vmatpush1.bf16.msra.mxu0 0
        %413 = vmatprep.subr.bf16.mxu0 0
        %414 = vmatpush1.bf16.msra.mxu0 0
        %415 = vmatprep.subr.bf16.mxu0 0
        %416 = vmatpush1.bf16.msra.mxu0 0
        %417 = vmatprep.mubr.bf16.mxu0 0
        %418 = vmatmul.mubr.bf16.gmra.mrb[0].mxu0 %v313
        %v419 = vpop.f32.mrb[0].mxu0
        %v420 = vadd.f32 %v335, %v419
        %v421 = vpop.f32.mrb[0].mxu0
        %v422 = vpop.f32.mrb[0].mxu0
        %v423 = vpop.f32.mrb[0].mxu0
        %424 = vdwg.mxu0
        %v425 = vpack.c.bf16 %v420, %v420
        %v426 = vld [vmem:[#allocation2] sm:$0xff]
        %v427 = vld [vmem:[#allocation9] sm:$0xf]
        %v428 = vld [vmem:[#allocation9 + $0x4] sm:$0xf]
        %v429 = vld [vmem:[#allocation9 + $0x8] sm:$0xf]
        %v430 = vld [vmem:[#allocation9 + $0xc] sm:$0xf]
        %v431 = vld [vmem:[#allocation9 + $0x10] sm:$0xf]
        %v432 = vld [vmem:[#allocation9 + $0x14] sm:$0xf]
        %v433 = vld [vmem:[#allocation9 + $0x18] sm:$0xf]
        %v434 = vld [vmem:[#allocation9 + $0x1c] sm:$0xf]
        %v435 = vld [vmem:[#allocation9 + $0x20] sm:$0xf]
        %v436 = vld [vmem:[#allocation9 + $0x24] sm:$0xf]
        %v437 = vld [vmem:[#allocation9 + $0x28] sm:$0xf]
        %v438 = vld [vmem:[#allocation9 + $0x2c] sm:$0xf]
        %v439 = vld [vmem:[#allocation9 + $0x30] sm:$0xf]
        %v440 = vld [vmem:[#allocation9 + $0x34] sm:$0xf]
        %v441 = vld [vmem:[#allocation9 + $0x38] sm:$0xf]
        %v442 = vld [vmem:[#allocation9 + $0x3c] sm:$0xf]
        %v459 = vunpack.c.l.b16 %v427
        %v460 = vunpack.c.l.b16 %v428
        %v461 = vunpack.c.l.b16 %v429
        %v462 = vunpack.c.l.b16 %v430
        %v463 = vunpack.c.l.b16 %v431
        %v464 = vunpack.c.l.b16 %v432
        %v465 = vunpack.c.l.b16 %v433
        %v466 = vunpack.c.l.b16 %v434
        %v467 = vunpack.c.l.b16 %v435
        %v468 = vunpack.c.l.b16 %v436
        %v469 = vunpack.c.l.b16 %v437
        %v470 = vunpack.c.l.b16 %v438
        %v471 = vunpack.c.l.b16 %v439
        %v472 = vunpack.c.l.b16 %v440
        %v473 = vunpack.c.l.b16 %v441
        %v474 = vunpack.c.l.b16 %v442
        %v475 = vpack.c.b16 %v460, %v459
        %v476 = vpack.c.b16 %v462, %v461
        %v477 = vpack.c.b16 %v464, %v463
        %v478 = vpack.c.b16 %v466, %v465
        %v479 = vpack.c.b16 %v468, %v467
        %v480 = vpack.c.b16 %v470, %v469
        %v481 = vpack.c.b16 %v472, %v471
        %v482 = vpack.c.b16 %v474, %v473
        %491 = vmatprep.subr.bf16.mxu0 0
        %492 = vmatpush1.bf16.msra.mxu0 %v475
        %493 = vmatprep.subr.bf16.mxu0 0
        %494 = vmatpush1.bf16.msra.mxu0 %v476
        %495 = vmatprep.subr.bf16.mxu0 0
        %496 = vmatpush1.bf16.msra.mxu0 %v477
        %497 = vmatprep.subr.bf16.mxu0 0
        %498 = vmatpush1.bf16.msra.mxu0 %v478
        %499 = vmatprep.subr.bf16.mxu0 0
        %500 = vmatpush1.bf16.msra.mxu0 %v479
        %501 = vmatprep.subr.bf16.mxu0 0
        %502 = vmatpush1.bf16.msra.mxu0 %v480
        %503 = vmatprep.subr.bf16.mxu0 0
        %504 = vmatpush1.bf16.msra.mxu0 %v481
        %505 = vmatprep.subr.bf16.mxu0 0
        %506 = vmatpush1.bf16.msra.mxu0 %v482
        %507 = vmatprep.subr.bf16.mxu0 0
        %508 = vmatpush1.bf16.msra.mxu0 0
        %509 = vmatprep.subr.bf16.mxu0 0
        %510 = vmatpush1.bf16.msra.mxu0 0
        %511 = vmatprep.subr.bf16.mxu0 0
        %512 = vmatpush1.bf16.msra.mxu0 0
        %513 = vmatprep.subr.bf16.mxu0 0
        %514 = vmatpush1.bf16.msra.mxu0 0
        %515 = vmatprep.subr.bf16.mxu0 0
        %516 = vmatpush1.bf16.msra.mxu0 0
        %517 = vmatprep.subr.bf16.mxu0 0
        %518 = vmatpush1.bf16.msra.mxu0 0
        %519 = vmatprep.subr.bf16.mxu0 0
        %520 = vmatpush1.bf16.msra.mxu0 0
        %521 = vmatprep.subr.bf16.mxu0 0
        %522 = vmatpush1.bf16.msra.mxu0 0
        %523 = vmatprep.mubr.bf16.mxu0 0
        %524 = vmatmul.mubr.bf16.gmra.mrb[0].mxu0 %v425
        %v525 = vpop.f32.mrb[0].mxu0
        %v526 = vadd.f32 0.0, %v525
        %v527 = vpop.f32.mrb[0].mxu0
        %v528 = vpop.f32.mrb[0].mxu0
        %v529 = vpop.f32.mrb[0].mxu0
        %530 = vdwg.mxu0
        %v531 = vadd.f32 %v426, %v526
        %532 = vst [vmem:[#allocation2] sm:$0xff] %v531
        // Predicated region
        $region65: #{seqskip_apply.1} parent=39 // pred_check
          %p533 = pneg %p307
        $region66: #{seqskip_apply.1} parent=39 // pred_check_branch
          %535 = sbr.rel (%p533) target = $region68
        $region67: #{seqskip_apply.1} parent=39 // pred_region
          %v536 = vld [vmem:[#allocation2] sm:$0xff]
          %v537 = vld [vmem:[#allocation11] sm:$0x1]
          %v539 = vlaneseq
          %v540 = vshrl.u32 %v539, 7
          %v541 = vsub.s32 0, %v540
          %v542 = vrot.slane %v537, %v541
          %v544 = vadd.f32 %v536, %v542
          %v545 = vadd.f32 %v544, %v312
          %546 = vst [vmem:[%s305] sm:$0xff] %v545
        $region68: #{seqskip_apply.1} parent=39 // pred_fallthru
          _
        %s547 = sand.u32 %s154, 1
        %s548 = scalar_lea.sflag [#allocation5], %s547
        %s549 = sand.u32 %s154, 1
        %s550 = smul.addr %s549, 8
        %s551 = scalar_lea.vmem [#allocation12], %s550
        // Predicated region
        $region69: #{seqskip_apply.1} parent=39 // pred_check
          %p552 = pneg %p164
        $region70: #{seqskip_apply.1} parent=39 // pred_check_branch
          %554 = sbr.rel (%p552) target = $region72
        $region71: #{seqskip_apply.1} parent=39 // pred_region
          %s556 = ssub.s32 128, 128
          %557 = vsyncadd %s548, %s556
          %s558 = smul.addr %s28, 128
          %s559 = scalar_lea.hbm %s5, %s558
          %s561 = sshll.u32 %s551, 4
          %s562 = int_to_ptr.vmem [resolvable:$true] %s561
          %564 = dma.vmem_to_hbm [thread:$0]  %s562, 128, %s559, %s548
        $region72: #{seqskip_apply.1} parent=39 // pred_fallthru
          _
      $region40: #{seqskip_apply.1} parent=5 // pred_fallthru
        _
      %p565 = scmp.le.s32.totalorder 2, %s19
      // Predicated region
      $region73: #{seqskip_apply.1} parent=5 // pred_check
        %p566 = pneg %p565
      $region74: #{seqskip_apply.1} parent=5 // pred_check_branch
        %568 = sbr.rel (%p566) target = $region76
      $region75: #{seqskip_apply.1} parent=5 // pred_region
        %s569 = ssub.s32 %s19, 2
        // Predicated region
        $region77: #{seqskip_apply.1} parent=75 // pred_check
          %p570 = pneg %p170
        $region78: #{seqskip_apply.1} parent=75 // pred_check_branch
          %572 = sbr.rel (%p570) target = $region80
        $region79: #{seqskip_apply.1} parent=75 // pred_region
          %s573 = sand.u32 %s155, 1
          %s574 = scalar_lea.sflag [#allocation5], %s573
          %s575 = sand.u32 %s155, 1
          %s576 = smul.addr %s575, 8
          %s577 = scalar_lea.vmem [#allocation12], %s576
          %578 = dma.done %s574, 128
        $region80: #{seqskip_apply.1} parent=75 // pred_fallthru
          _
      $region76: #{seqskip_apply.1} parent=5 // pred_fallthru
        _
    $region6: #{seqskip_apply.1} parent=1 // loop_footer
      %s23 = sadd.s32 1, %s19
    $region7: #{seqskip_apply.1} parent=1 // loop_footer_branch
      %18 = sbr.rel target = $region3
    $region8: #{seqskip_apply.1} parent=1 // loop_exit
      _
    %579 = vsyncpa [#allocation4], 1
    %s580 = scalar_lea.sflag [#allocation4], 1
    %581 = vsyncpa %s580, 1
    %582 = vsyncpa [#allocation7], 1
    %583 = vsyncpa [#allocation10], 1
    %584 = vsyncpa [#allocation5], 1
    %s585 = scalar_lea.sflag [#allocation5], 1
    %586 = vsyncpa %s585, 1

</llo_original>
